<compile_context>
chip_gen: v5e
topology: v5e:2x2
jax: 0.10.0
libtpu: 0.0.40
codegen_flags: <defaults>
</compile_context>

<pallas_src>
import functools

import jax
import jax.numpy as jnp
from jax.experimental import pallas as pl
from jax.experimental.pallas import tpu as pltpu

NEG_SLOPE = 0.01          # PyTorch nn.LeakyReLU default negative_slope
_LANE = 128
_SUBLANE = 8
_COMPUTE_DTYPE = jnp.bfloat16   # MXU-native compute dtype (accumulation is f32)


def _leaky_relu(x):
    # max(x, a*x) == LeakyReLU(x) for 0 < a < 1; one VPU op cheaper than where().
    return jnp.maximum(x, NEG_SLOPE * x)


def _round_up(n, m):
    return ((n + m - 1) // m) * m


def _pad2(a, rows, cols):
    r, c = a.shape
    return jnp.pad(a, ((0, rows - r), (0, cols - c)))


def _pick_tb(batch):
    """Batch tile: large enough to amortize per-step overhead, but giving >=2
    grid steps (so v7x's two TensorCores both get work) whenever B allows."""
    if batch <= _SUBLANE:
        return _round_up(max(batch, 1), _SUBLANE)
    return min(512, _round_up(pl.cdiv(batch, 2), _SUBLANE))


def _vmem_limit_bytes(need):
    """Generation-aware scoped-VMEM request (v5e/v6e: 128 MiB phys, v7x: 64 MiB)."""
    cap = 64 << 20
    try:
        info = pltpu.get_tpu_info()
        cap = int(getattr(info, "vmem_capacity_bytes", cap)) or cap
    except Exception:
        pass
    return int(min(max(need, 32 << 20), (cap * 7) // 8))


# ---------------------------------------------------------------------------
# Fused kernel: 3x (Linear + LeakyReLU) + classifier, with the concatenated
# U_B features folded in via split classifier-weight slices.
# ---------------------------------------------------------------------------
def _make_fused_kernel(n_u):
    def kernel(*refs):
        (x_ref, w1_ref, b1_ref, w2_ref, b2_ref, w3_ref, b3_ref,
         wc0_ref, bc_ref) = refs[:9]
        o_ref = refs[-1]
        cdt = _COMPUTE_DTYPE

        h = _leaky_relu(
            jnp.dot(x_ref[...].astype(cdt), w1_ref[...],
                    preferred_element_type=jnp.float32) + b1_ref[...])
        h = _leaky_relu(
            jnp.dot(h.astype(cdt), w2_ref[...],
                    preferred_element_type=jnp.float32) + b2_ref[...])
        h = _leaky_relu(
            jnp.dot(h.astype(cdt), w3_ref[...],
                    preferred_element_type=jnp.float32) + b3_ref[...])

        # classifier: h3 block of wc, plus one block per U_B tensor (replaces
        # the lane-axis concat), all accumulated in f32.
        acc = jnp.dot(h.astype(cdt), wc0_ref[...],
                      preferred_element_type=jnp.float32) + bc_ref[...]
        for j in range(n_u):
            u_ref = refs[9 + 2 * j]
            wcj_ref = refs[10 + 2 * j]
            acc = acc + jnp.dot(u_ref[...].astype(cdt), wcj_ref[...],
                                preferred_element_type=jnp.float32)
        o_ref[...] = acc.astype(o_ref.dtype)

    return kernel


# ---------------------------------------------------------------------------
# active_model forward (single fused pallas_call), jitted
# ---------------------------------------------------------------------------
def _forward_impl(params, x, us, single_buf):
    us = list(us)
    n_u = len(us)
    x = x.astype(jnp.float32)

    B, D0 = x.shape
    D1 = params["w1"].shape[1]
    D2 = params["w2"].shape[1]
    D3 = params["w3"].shape[1]
    NC = params["wc"].shape[1]
    u_widths = [int(u.shape[1]) for u in us]
    assert params["wc"].shape[0] == D3 + sum(u_widths), "classifier width mismatch"

    # Pad only the weight *output* dims to lane multiples (lane-dense matmul N
    # axis + lane-dense output store).  Streamed tensors keep native width
    # (block last dim == full array dim is legal), so no host-side lane padding.
    D1p, D2p, D3p, NCp = (_round_up(d, _LANE) for d in (D1, D2, D3, NC))

    TB = _pick_tb(B)
    Bp = _round_up(B, TB)
    grid = (Bp // TB,)

    # Resident weights in bf16 (halves weight DMA + VMEM), biases stay f32.
    wdt = _COMPUTE_DTYPE
    w1p = _pad2(params["w1"], D0, D1p).astype(wdt)
    b1p = _pad2(params["b1"], 1, D1p)
    w2p = _pad2(params["w2"], D1p, D2p).astype(wdt)
    b2p = _pad2(params["b2"], 1, D2p)
    w3p = _pad2(params["w3"], D2p, D3p).astype(wdt)
    b3p = _pad2(params["b3"], 1, D3p)

    # Split classifier weight by input rows: first D3 rows pair with h3, the
    # remaining chunks pair with each U_B tensor (this replaces torch.cat).
    wc, bc = params["wc"], params["bc"]
    off = 0
    wc0p = _pad2(wc[off:off + D3], D3p, NCp).astype(wdt)
    off += D3
    bcp = _pad2(bc, 1, NCp)
    u_operands = []
    for u, wu in zip(us, u_widths):
        wcj = wc[off:off + wu]
        off += wu
        u_operands.append(u.astype(jnp.float32))
        u_operands.append(_pad2(wcj, wu, NCp).astype(wdt))

    # Row-pad streamed activations only when B is not a tile multiple.
    if Bp != B:
        x = jnp.pad(x, ((0, Bp - B), (0, 0)))
        for j in range(n_u):
            u_operands[2 * j] = jnp.pad(u_operands[2 * j], ((0, Bp - B), (0, 0)))

    def _stream(cols):
        return pl.BlockSpec((TB, cols), lambda i: (i, 0))

    def _resident(rows, cols):
        if single_buf:
            # Constant index_map -> fetched once; single buffer halves its VMEM.
            return pl.BlockSpec((rows, cols), lambda i: (0, 0),
                                pipeline_mode=pl.Buffered(1))
        return pl.BlockSpec((rows, cols), lambda i: (0, 0))

    in_specs = [
        _stream(D0),
        _resident(D0, D1p), _resident(1, D1p),
        _resident(D1p, D2p), _resident(1, D2p),
        _resident(D2p, D3p), _resident(1, D3p),
        _resident(D3p, NCp), _resident(1, NCp),
    ]
    for wu in u_widths:
        in_specs.append(_stream(wu))
        in_specs.append(_resident(wu, NCp))
    out_specs = pl.BlockSpec((TB, NCp), lambda i: (i, 0))

    operands = [x, w1p, b1p, w2p, b2p, w3p, b3p, wc0p, bcp] + u_operands

    # --- VMEM + cost bookkeeping (resident blocks counted once) -------------
    res_w_elems = (D0 * D1p + D1p * D2p + D2p * D3p + D3p * NCp
                   + sum(wu * NCp for wu in u_widths))
    res_b_elems = D1p + D2p + D3p + NCp
    res_bufs = 1 if single_buf else 2
    resident_bytes = res_bufs * (2 * res_w_elems + 4 * res_b_elems)
    stream_bytes = 2 * 4 * TB * (D0 + sum(u_widths) + NCp)   # double-buffered
    scratch_bytes = 4 * TB * (D1p + D2p + D3p + 2 * NCp)     # intermediates headroom
    vmem_bytes = _vmem_limit_bytes(
        resident_bytes + stream_bytes + scratch_bytes + (2 << 20))

    flops = 2 * Bp * (D0 * D1p + D1p * D2p + D2p * D3p + D3p * NCp
                      + sum(wu * NCp for wu in u_widths))
    bytes_accessed = (2 * res_w_elems + 4 * res_b_elems          # weights once
                      + 4 * Bp * (D0 + sum(u_widths) + NCp))     # streamed
    cost = pl.CostEstimate(flops=int(flops), transcendentals=0,
                           bytes_accessed=int(bytes_accessed))

    logits_p = pl.pallas_call(
        _make_fused_kernel(n_u),
        out_shape=jax.ShapeDtypeStruct((Bp, NCp), jnp.float32),
        grid=grid,
        in_specs=in_specs,
        out_specs=out_specs,
        compiler_params=pltpu.CompilerParams(
            dimension_semantics=("parallel",),
            vmem_limit_bytes=vmem_bytes),
        cost_estimate=cost,
    )(*operands)

    # TODO(synk): for weight sets exceeding per-TC VMEM even in bf16 (v7x 64 MiB),
    # add a K-tiled 'arbitrary' grid axis with an f32 accumulator as fallback.
    return logits_p[:B, :NC]


@functools.partial(jax.jit, static_argnames=("single_buf",))
def _forward_jit(params, x, us, single_buf):
    return _forward_impl(params, x, us, single_buf)


def active_model_forward(params, x, U_B=None):
    us = tuple(jnp.asarray(u, jnp.float32) for u in U_B) if U_B is not None else ()
    try:
        out = _forward_jit(params, x, us, single_buf=True)
        return jax.block_until_ready(out)
    except Exception:
        # pl.Buffered(1) single-buffering not available in this environment ->
        # fall back to default double-buffered resident specs.
        out = _forward_jit(params, x, us, single_buf=False)
        return jax.block_until_ready(out)


# ---------------------------------------------------------------------------
# Deterministic parameter init (mirrors shapes from active_model.__init__)
# ---------------------------------------------------------------------------
def init_params(key, input_dim, intern_dim, num_classes, k=2):
    ks = jax.random.split(key, 8)
    d1, d2, d3 = input_dim * 4, intern_dim * 2, intern_dim

    def lin(kw, kb, fan_in, fan_out):
        bound = 1.0 / jnp.sqrt(fan_in)
        w = jax.random.uniform(kw, (fan_in, fan_out), jnp.float32, -bound, bound)
        b = jax.random.uniform(kb, (1, fan_out), jnp.float32, -bound, bound)
        return w, b

    w1, b1 = lin(ks[0], ks[1], input_dim, d1)
    w2, b2 = lin(ks[2], ks[3], d1, d2)
    w3, b3 = lin(ks[4], ks[5], d2, d3)
    wc, bc = lin(ks[6], ks[7], intern_dim * k, num_classes)
    return dict(w1=w1, b1=b1, w2=w2, b2=b2, w3=w3, b3=b3, wc=wc, bc=bc)


# ---------------------------------------------------------------------------
# Pure-JAX reference for sanity checking
# ---------------------------------------------------------------------------
def reference_forward(params, x, U_B=None):
    h = _leaky_relu(x @ params["w1"] + params["b1"])
    h = _leaky_relu(h @ params["w2"] + params["b2"])
    h = _leaky_relu(h @ params["w3"] + params["b3"])
    if U_B is not None:
        h = jnp.concatenate([h] + [U for U in U_B], axis=1)
    return h @ params["wc"] + params["bc"]


if __name__ == "__main__":
    batch = 8
    input_dim = 32
    intern_dim = 32
    num_classes = 8
    k = 2

    key = jax.random.PRNGKey(0)
    kp, kx, ku = jax.random.split(key, 3)

    params = init_params(kp, input_dim, intern_dim, num_classes, k=k)
    x = jax.random.normal(kx, (batch, input_dim), jnp.float32)
    # U_B: passive-party output; with k=2 one tensor of shape (batch, intern_dim)
    # so the classifier input width is intern_dim * k.
    U_B = [jax.random.normal(ku, (batch, intern_dim), jnp.float32)]

    logits = active_model_forward(params, x, U_B)
    jax.block_until_ready(logits)

    ref = reference_forward(params, x, U_B)
    assert logits.shape == (batch, num_classes)
    # bf16 weights inside the kernel -> looser tolerance than pure-f32.
    assert jnp.allclose(logits, ref, atol=2e-2, rtol=5e-2), (
        float(jnp.max(jnp.abs(logits - ref))))

    print("KERNEL_OK")
</pallas_src>

<mosaic_0001>
module attributes {stable_mosaic.version = 11 : i64} {
  func.func @kernel(%arg0: i32, %arg1: memref<8x32xf32, #tpu.memory_space<vmem>>, %arg2: memref<32x128xbf16, #tpu.memory_space<vmem>>, %arg3: memref<1x128xf32, #tpu.memory_space<vmem>>, %arg4: memref<128x128xbf16, #tpu.memory_space<vmem>>, %arg5: memref<1x128xf32, #tpu.memory_space<vmem>>, %arg6: memref<128x128xbf16, #tpu.memory_space<vmem>>, %arg7: memref<1x128xf32, #tpu.memory_space<vmem>>, %arg8: memref<128x128xbf16, #tpu.memory_space<vmem>>, %arg9: memref<1x128xf32, #tpu.memory_space<vmem>>, %arg10: memref<8x32xf32, #tpu.memory_space<vmem>>, %arg11: memref<32x128xbf16, #tpu.memory_space<vmem>>, %arg12: memref<8x128xf32, #tpu.memory_space<vmem>>) attributes {dimension_semantics = [#tpu.dimension_semantics<parallel>], iteration_bounds = array<i64: 1>, scalar_prefetch = 0 : i64, scratch_operands = 0 : i64, tpu.core_type = #tpu.core_type<tc>, window_params = [{transform_indices = @transform_0, window_bounds = array<i64: 8, 32>}, {pipeline_mode = #tpu.pipeline_mode<synchronous>, transform_indices = @transform_1, window_bounds = array<i64: 32, 128>}, {pipeline_mode = #tpu.pipeline_mode<synchronous>, transform_indices = @transform_2, window_bounds = array<i64: 1, 128>}, {pipeline_mode = #tpu.pipeline_mode<synchronous>, transform_indices = @transform_3, window_bounds = array<i64: 128, 128>}, {pipeline_mode = #tpu.pipeline_mode<synchronous>, transform_indices = @transform_4, window_bounds = array<i64: 1, 128>}, {pipeline_mode = #tpu.pipeline_mode<synchronous>, transform_indices = @transform_5, window_bounds = array<i64: 128, 128>}, {pipeline_mode = #tpu.pipeline_mode<synchronous>, transform_indices = @transform_6, window_bounds = array<i64: 1, 128>}, {pipeline_mode = #tpu.pipeline_mode<synchronous>, transform_indices = @transform_7, window_bounds = array<i64: 128, 128>}, {pipeline_mode = #tpu.pipeline_mode<synchronous>, transform_indices = @transform_8, window_bounds = array<i64: 1, 128>}, {transform_indices = @transform_9, window_bounds = array<i64: 8, 32>}, {pipeline_mode = #tpu.pipeline_mode<synchronous>, transform_indices = @transform_10, window_bounds = array<i64: 32, 128>}, {transform_indices = @transform_11, window_bounds = array<i64: 8, 128>}]} {
    %c0 = arith.constant 0 : index
    %c0_0 = arith.constant 0 : index
    %0 = vector.load %arg1[%c0, %c0_0] : memref<8x32xf32, #tpu.memory_space<vmem>>, vector<8x32xf32>
    %1 = arith.truncf %0 : vector<8x32xf32> to vector<8x32xbf16>
    %c0_1 = arith.constant 0 : index
    %c0_2 = arith.constant 0 : index
    %2 = vector.load %arg2[%c0_1, %c0_2] : memref<32x128xbf16, #tpu.memory_space<vmem>>, vector<32x128xbf16>
    %cst = arith.constant dense<0.000000e+00> : vector<8x128xf32>
    %3 = tpu.matmul %1, %2, %cst {dimension_numbers = #tpu.dot_dimension_numbers<[1], [0], [0], [1], [0, 0, 1, 1], [], []>} : vector<8x32xbf16>, vector<32x128xbf16>, vector<8x128xf32> -> vector<8x128xf32>
    %c0_3 = arith.constant 0 : index
    %c0_4 = arith.constant 0 : index
    %4 = vector.load %arg3[%c0_3, %c0_4] : memref<1x128xf32, #tpu.memory_space<vmem>>, vector<1x128xf32>
    %5 = vector.broadcast %4 : vector<1x128xf32> to vector<8x128xf32>
    %6 = arith.addf %3, %5 : vector<8x128xf32>
    %cst_5 = arith.constant 0.00999999977 : f32
    %7 = vector.broadcast %cst_5 : f32 to vector<8x128xf32>
    %8 = arith.mulf %7, %6 : vector<8x128xf32>
    %9 = arith.maximumf %6, %8 : vector<8x128xf32>
    %10 = arith.truncf %9 : vector<8x128xf32> to vector<8x128xbf16>
    %c0_6 = arith.constant 0 : index
    %c0_7 = arith.constant 0 : index
    %11 = vector.load %arg4[%c0_6, %c0_7] : memref<128x128xbf16, #tpu.memory_space<vmem>>, vector<128x128xbf16>
    %cst_8 = arith.constant dense<0.000000e+00> : vector<8x128xf32>
    %12 = tpu.matmul %10, %11, %cst_8 {dimension_numbers = #tpu.dot_dimension_numbers<[1], [0], [0], [1], [0, 0, 1, 1], [], []>} : vector<8x128xbf16>, vector<128x128xbf16>, vector<8x128xf32> -> vector<8x128xf32>
    %c0_9 = arith.constant 0 : index
    %c0_10 = arith.constant 0 : index
    %13 = vector.load %arg5[%c0_9, %c0_10] : memref<1x128xf32, #tpu.memory_space<vmem>>, vector<1x128xf32>
    %14 = vector.broadcast %13 : vector<1x128xf32> to vector<8x128xf32>
    %15 = arith.addf %12, %14 : vector<8x128xf32>
    %cst_11 = arith.constant 0.00999999977 : f32
    %16 = vector.broadcast %cst_11 : f32 to vector<8x128xf32>
    %17 = arith.mulf %16, %15 : vector<8x128xf32>
    %18 = arith.maximumf %15, %17 : vector<8x128xf32>
    %19 = arith.truncf %18 : vector<8x128xf32> to vector<8x128xbf16>
    %c0_12 = arith.constant 0 : index
    %c0_13 = arith.constant 0 : index
    %20 = vector.load %arg6[%c0_12, %c0_13] : memref<128x128xbf16, #tpu.memory_space<vmem>>, vector<128x128xbf16>
    %cst_14 = arith.constant dense<0.000000e+00> : vector<8x128xf32>
    %21 = tpu.matmul %19, %20, %cst_14 {dimension_numbers = #tpu.dot_dimension_numbers<[1], [0], [0], [1], [0, 0, 1, 1], [], []>} : vector<8x128xbf16>, vector<128x128xbf16>, vector<8x128xf32> -> vector<8x128xf32>
    %c0_15 = arith.constant 0 : index
    %c0_16 = arith.constant 0 : index
    %22 = vector.load %arg7[%c0_15, %c0_16] : memref<1x128xf32, #tpu.memory_space<vmem>>, vector<1x128xf32>
    %23 = vector.broadcast %22 : vector<1x128xf32> to vector<8x128xf32>
    %24 = arith.addf %21, %23 : vector<8x128xf32>
    %cst_17 = arith.constant 0.00999999977 : f32
    %25 = vector.broadcast %cst_17 : f32 to vector<8x128xf32>
    %26 = arith.mulf %25, %24 : vector<8x128xf32>
    %27 = arith.maximumf %24, %26 : vector<8x128xf32>
    %28 = arith.truncf %27 : vector<8x128xf32> to vector<8x128xbf16>
    %c0_18 = arith.constant 0 : index
    %c0_19 = arith.constant 0 : index
    %29 = vector.load %arg8[%c0_18, %c0_19] : memref<128x128xbf16, #tpu.memory_space<vmem>>, vector<128x128xbf16>
    %cst_20 = arith.constant dense<0.000000e+00> : vector<8x128xf32>
    %30 = tpu.matmul %28, %29, %cst_20 {dimension_numbers = #tpu.dot_dimension_numbers<[1], [0], [0], [1], [0, 0, 1, 1], [], []>} : vector<8x128xbf16>, vector<128x128xbf16>, vector<8x128xf32> -> vector<8x128xf32>
    %c0_21 = arith.constant 0 : index
    %c0_22 = arith.constant 0 : index
    %31 = vector.load %arg9[%c0_21, %c0_22] : memref<1x128xf32, #tpu.memory_space<vmem>>, vector<1x128xf32>
    %32 = vector.broadcast %31 : vector<1x128xf32> to vector<8x128xf32>
    %33 = arith.addf %30, %32 : vector<8x128xf32>
    %c0_23 = arith.constant 0 : index
    %c0_24 = arith.constant 0 : index
    %34 = vector.load %arg10[%c0_23, %c0_24] : memref<8x32xf32, #tpu.memory_space<vmem>>, vector<8x32xf32>
    %35 = arith.truncf %34 : vector<8x32xf32> to vector<8x32xbf16>
    %c0_25 = arith.constant 0 : index
    %c0_26 = arith.constant 0 : index
    %36 = vector.load %arg11[%c0_25, %c0_26] : memref<32x128xbf16, #tpu.memory_space<vmem>>, vector<32x128xbf16>
    %cst_27 = arith.constant dense<0.000000e+00> : vector<8x128xf32>
    %37 = tpu.matmul %35, %36, %cst_27 {dimension_numbers = #tpu.dot_dimension_numbers<[1], [0], [0], [1], [0, 0, 1, 1], [], []>} : vector<8x32xbf16>, vector<32x128xbf16>, vector<8x128xf32> -> vector<8x128xf32>
    %38 = arith.addf %33, %37 : vector<8x128xf32>
    %c0_28 = arith.constant 0 : index
    %c0_29 = arith.constant 0 : index
    %39 = vector.load %arg12[%c0_28, %c0_29] : memref<8x128xf32, #tpu.memory_space<vmem>>, vector<8x128xf32>
    tpu.vector_store %arg12[%c0_28, %c0_29], %38 {strides = array<i32>} : memref<8x128xf32, #tpu.memory_space<vmem>>, vector<8x128xf32>,
    return
  }
  func.func @transform_0(%arg0: i32) -> (i32, i32) {
    %c0_i32 = arith.constant 0 : i32
    %c0_i32_0 = arith.constant 0 : i32
    return %arg0, %c0_i32 : i32, i32
  }
  func.func @transform_1(%arg0: i32) -> (i32, i32) {
    %c0_i32 = arith.constant 0 : i32
    %c0_i32_0 = arith.constant 0 : i32
    %c0_i32_1 = arith.constant 0 : i32
    return %c0_i32, %c0_i32_0 : i32, i32
  }
  func.func @transform_2(%arg0: i32) -> (i32, i32) {
    %c0_i32 = arith.constant 0 : i32
    %c0_i32_0 = arith.constant 0 : i32
    %c0_i32_1 = arith.constant 0 : i32
    return %c0_i32, %c0_i32_0 : i32, i32
  }
  func.func @transform_3(%arg0: i32) -> (i32, i32) {
    %c0_i32 = arith.constant 0 : i32
    %c0_i32_0 = arith.constant 0 : i32
    %c0_i32_1 = arith.constant 0 : i32
    return %c0_i32, %c0_i32_0 : i32, i32
  }
  func.func @transform_4(%arg0: i32) -> (i32, i32) {
    %c0_i32 = arith.constant 0 : i32
    %c0_i32_0 = arith.constant 0 : i32
    %c0_i32_1 = arith.constant 0 : i32
    return %c0_i32, %c0_i32_0 : i32, i32
  }
  func.func @transform_5(%arg0: i32) -> (i32, i32) {
    %c0_i32 = arith.constant 0 : i32
    %c0_i32_0 = arith.constant 0 : i32
    %c0_i32_1 = arith.constant 0 : i32
    return %c0_i32, %c0_i32_0 : i32, i32
  }
  func.func @transform_6(%arg0: i32) -> (i32, i32) {
    %c0_i32 = arith.constant 0 : i32
    %c0_i32_0 = arith.constant 0 : i32
    %c0_i32_1 = arith.constant 0 : i32
    return %c0_i32, %c0_i32_0 : i32, i32
  }
  func.func @transform_7(%arg0: i32) -> (i32, i32) {
    %c0_i32 = arith.constant 0 : i32
    %c0_i32_0 = arith.constant 0 : i32
    %c0_i32_1 = arith.constant 0 : i32
    return %c0_i32, %c0_i32_0 : i32, i32
  }
  func.func @transform_8(%arg0: i32) -> (i32, i32) {
    %c0_i32 = arith.constant 0 : i32
    %c0_i32_0 = arith.constant 0 : i32
    %c0_i32_1 = arith.constant 0 : i32
    return %c0_i32, %c0_i32_0 : i32, i32
  }
  func.func @transform_9(%arg0: i32) -> (i32, i32) {
    %c0_i32 = arith.constant 0 : i32
    %c0_i32_0 = arith.constant 0 : i32
    return %arg0, %c0_i32 : i32, i32
  }
  func.func @transform_10(%arg0: i32) -> (i32, i32) {
    %c0_i32 = arith.constant 0 : i32
    %c0_i32_0 = arith.constant 0 : i32
    %c0_i32_1 = arith.constant 0 : i32
    return %c0_i32, %c0_i32_0 : i32, i32
  }
  func.func @transform_11(%arg0: i32) -> (i32, i32) {
    %c0_i32 = arith.constant 0 : i32
    %c0_i32_0 = arith.constant 0 : i32
    return %arg0, %c0_i32 : i32, i32
  }
}

module attributes {stable_mosaic.version = 11 : i64} {
  func.func @kernel(%arg0: i32, %arg1: memref<8x32xf32, #tpu.memory_space<vmem>>, %arg2: memref<32x128xbf16, #tpu.memory_space<vmem>>, %arg3: memref<1x128xf32, #tpu.memory_space<vmem>>, %arg4: memref<128x128xbf16, #tpu.memory_space<vmem>>, %arg5: memref<1x128xf32, #tpu.memory_space<vmem>>, %arg6: memref<128x128xbf16, #tpu.memory_space<vmem>>, %arg7: memref<1x128xf32, #tpu.memory_space<vmem>>, %arg8: memref<128x128xbf16, #tpu.memory_space<vmem>>, %arg9: memref<1x128xf32, #tpu.memory_space<vmem>>, %arg10: memref<8x32xf32, #tpu.memory_space<vmem>>, %arg11: memref<32x128xbf16, #tpu.memory_space<vmem>>, %arg12: memref<8x128xf32, #tpu.memory_space<vmem>>) attributes {dimension_semantics = [#tpu.dimension_semantics<parallel>], iteration_bounds = array<i64: 1>, scalar_prefetch = 0 : i64, scratch_operands = 0 : i64, tpu.core_type = #tpu.core_type<tc>, window_params = [{transform_indices = @transform_0, window_bounds = array<i64: 8, 32>}, {pipeline_mode = #tpu.pipeline_mode<synchronous>, transform_indices = @transform_1, window_bounds = array<i64: 32, 128>}, {pipeline_mode = #tpu.pipeline_mode<synchronous>, transform_indices = @transform_2, window_bounds = array<i64: 1, 128>}, {pipeline_mode = #tpu.pipeline_mode<synchronous>, transform_indices = @transform_3, window_bounds = array<i64: 128, 128>}, {pipeline_mode = #tpu.pipeline_mode<synchronous>, transform_indices = @transform_4, window_bounds = array<i64: 1, 128>}, {pipeline_mode = #tpu.pipeline_mode<synchronous>, transform_indices = @transform_5, window_bounds = array<i64: 128, 128>}, {pipeline_mode = #tpu.pipeline_mode<synchronous>, transform_indices = @transform_6, window_bounds = array<i64: 1, 128>}, {pipeline_mode = #tpu.pipeline_mode<synchronous>, transform_indices = @transform_7, window_bounds = array<i64: 128, 128>}, {pipeline_mode = #tpu.pipeline_mode<synchronous>, transform_indices = @transform_8, window_bounds = array<i64: 1, 128>}, {transform_indices = @transform_9, window_bounds = array<i64: 8, 32>}, {pipeline_mode = #tpu.pipeline_mode<synchronous>, transform_indices = @transform_10, window_bounds = array<i64: 32, 128>}, {transform_indices = @transform_11, window_bounds = array<i64: 8, 128>}]} {
    %c0 = arith.constant 0 : index
    %c0_0 = arith.constant 0 : index
    %0 = vector.load %arg1[%c0, %c0_0] : memref<8x32xf32, #tpu.memory_space<vmem>>, vector<8x32xf32>
    %1 = arith.truncf %0 : vector<8x32xf32> to vector<8x32xbf16>
    %c0_1 = arith.constant 0 : index
    %c0_2 = arith.constant 0 : index
    %2 = vector.load %arg2[%c0_1, %c0_2] : memref<32x128xbf16, #tpu.memory_space<vmem>>, vector<32x128xbf16>
    %cst = arith.constant dense<0.000000e+00> : vector<8x128xf32>
    %3 = tpu.matmul %1, %2, %cst {dimension_numbers = #tpu.dot_dimension_numbers<[1], [0], [0], [1], [0, 0, 1, 1], [], []>} : vector<8x32xbf16>, vector<32x128xbf16>, vector<8x128xf32> -> vector<8x128xf32>
    %c0_3 = arith.constant 0 : index
    %c0_4 = arith.constant 0 : index
    %4 = vector.load %arg3[%c0_3, %c0_4] : memref<1x128xf32, #tpu.memory_space<vmem>>, vector<1x128xf32>
    %5 = vector.broadcast %4 : vector<1x128xf32> to vector<8x128xf32>
    %6 = arith.addf %3, %5 : vector<8x128xf32>
    %cst_5 = arith.constant 0.00999999977 : f32
    %7 = vector.broadcast %cst_5 : f32 to vector<8x128xf32>
    %8 = arith.mulf %7, %6 : vector<8x128xf32>
    %9 = arith.maximumf %6, %8 : vector<8x128xf32>
    %10 = arith.truncf %9 : vector<8x128xf32> to vector<8x128xbf16>
    %c0_6 = arith.constant 0 : index
    %c0_7 = arith.constant 0 : index
    %11 = vector.load %arg4[%c0_6, %c0_7] : memref<128x128xbf16, #tpu.memory_space<vmem>>, vector<128x128xbf16>
    %cst_8 = arith.constant dense<0.000000e+00> : vector<8x128xf32>
    %12 = tpu.matmul %10, %11, %cst_8 {dimension_numbers = #tpu.dot_dimension_numbers<[1], [0], [0], [1], [0, 0, 1, 1], [], []>} : vector<8x128xbf16>, vector<128x128xbf16>, vector<8x128xf32> -> vector<8x128xf32>
    %c0_9 = arith.constant 0 : index
    %c0_10 = arith.constant 0 : index
    %13 = vector.load %arg5[%c0_9, %c0_10] : memref<1x128xf32, #tpu.memory_space<vmem>>, vector<1x128xf32>
    %14 = vector.broadcast %13 : vector<1x128xf32> to vector<8x128xf32>
    %15 = arith.addf %12, %14 : vector<8x128xf32>
    %cst_11 = arith.constant 0.00999999977 : f32
    %16 = vector.broadcast %cst_11 : f32 to vector<8x128xf32>
    %17 = arith.mulf %16, %15 : vector<8x128xf32>
    %18 = arith.maximumf %15, %17 : vector<8x128xf32>
    %19 = arith.truncf %18 : vector<8x128xf32> to vector<8x128xbf16>
    %c0_12 = arith.constant 0 : index
    %c0_13 = arith.constant 0 : index
    %20 = vector.load %arg6[%c0_12, %c0_13] : memref<128x128xbf16, #tpu.memory_space<vmem>>, vector<128x128xbf16>
    %cst_14 = arith.constant dense<0.000000e+00> : vector<8x128xf32>
    %21 = tpu.matmul %19, %20, %cst_14 {dimension_numbers = #tpu.dot_dimension_numbers<[1], [0], [0], [1], [0, 0, 1, 1], [], []>} : vector<8x128xbf16>, vector<128x128xbf16>, vector<8x128xf32> -> vector<8x128xf32>
    %c0_15 = arith.constant 0 : index
    %c0_16 = arith.constant 0 : index
    %22 = vector.load %arg7[%c0_15, %c0_16] : memref<1x128xf32, #tpu.memory_space<vmem>>, vector<1x128xf32>
    %23 = vector.broadcast %22 : vector<1x128xf32> to vector<8x128xf32>
    %24 = arith.addf %21, %23 : vector<8x128xf32>
    %cst_17 = arith.constant 0.00999999977 : f32
    %25 = vector.broadcast %cst_17 : f32 to vector<8x128xf32>
    %26 = arith.mulf %25, %24 : vector<8x128xf32>
    %27 = arith.maximumf %24, %26 : vector<8x128xf32>
    %28 = arith.truncf %27 : vector<8x128xf32> to vector<8x128xbf16>
    %c0_18 = arith.constant 0 : index
    %c0_19 = arith.constant 0 : index
    %29 = vector.load %arg8[%c0_18, %c0_19] : memref<128x128xbf16, #tpu.memory_space<vmem>>, vector<128x128xbf16>
    %cst_20 = arith.constant dense<0.000000e+00> : vector<8x128xf32>
    %30 = tpu.matmul %28, %29, %cst_20 {dimension_numbers = #tpu.dot_dimension_numbers<[1], [0], [0], [1], [0, 0, 1, 1], [], []>} : vector<8x128xbf16>, vector<128x128xbf16>, vector<8x128xf32> -> vector<8x128xf32>
    %c0_21 = arith.constant 0 : index
    %c0_22 = arith.constant 0 : index
    %31 = vector.load %arg9[%c0_21, %c0_22] : memref<1x128xf32, #tpu.memory_space<vmem>>, vector<1x128xf32>
    %32 = vector.broadcast %31 : vector<1x128xf32> to vector<8x128xf32>
    %33 = arith.addf %30, %32 : vector<8x128xf32>
    %c0_23 = arith.constant 0 : index
    %c0_24 = arith.constant 0 : index
    %34 = vector.load %arg10[%c0_23, %c0_24] : memref<8x32xf32, #tpu.memory_space<vmem>>, vector<8x32xf32>
    %35 = arith.truncf %34 : vector<8x32xf32> to vector<8x32xbf16>
    %c0_25 = arith.constant 0 : index
    %c0_26 = arith.constant 0 : index
    %36 = vector.load %arg11[%c0_25, %c0_26] : memref<32x128xbf16, #tpu.memory_space<vmem>>, vector<32x128xbf16>
    %cst_27 = arith.constant dense<0.000000e+00> : vector<8x128xf32>
    %37 = tpu.matmul %35, %36, %cst_27 {dimension_numbers = #tpu.dot_dimension_numbers<[1], [0], [0], [1], [0, 0, 1, 1], [], []>} : vector<8x32xbf16>, vector<32x128xbf16>, vector<8x128xf32> -> vector<8x128xf32>
    %38 = arith.addf %33, %37 : vector<8x128xf32>
    %c0_28 = arith.constant 0 : index
    %c0_29 = arith.constant 0 : index
    %39 = vector.load %arg12[%c0_28, %c0_29] : memref<8x128xf32, #tpu.memory_space<vmem>>, vector<8x128xf32>
    tpu.vector_store %arg12[%c0_28, %c0_29], %38 {strides = array<i32>} : memref<8x128xf32, #tpu.memory_space<vmem>>, vector<8x128xf32>,
    return
  }
  func.func @transform_0(%arg0: i32) -> (i32, i32) {
    %c0_i32 = arith.constant 0 : i32
    %c0_i32_0 = arith.constant 0 : i32
    return %arg0, %c0_i32 : i32, i32
  }
  func.func @transform_1(%arg0: i32) -> (i32, i32) {
    %c0_i32 = arith.constant 0 : i32
    %c0_i32_0 = arith.constant 0 : i32
    %c0_i32_1 = arith.constant 0 : i32
    return %c0_i32, %c0_i32_0 : i32, i32
  }
  func.func @transform_2(%arg0: i32) -> (i32, i32) {
    %c0_i32 = arith.constant 0 : i32
    %c0_i32_0 = arith.constant 0 : i32
    %c0_i32_1 = arith.constant 0 : i32
    return %c0_i32, %c0_i32_0 : i32, i32
  }
  func.func @transform_3(%arg0: i32) -> (i32, i32) {
    %c0_i32 = arith.constant 0 : i32
    %c0_i32_0 = arith.constant 0 : i32
    %c0_i32_1 = arith.constant 0 : i32
    return %c0_i32, %c0_i32_0 : i32, i32
  }
  func.func @transform_4(%arg0: i32) -> (i32, i32) {
    %c0_i32 = arith.constant 0 : i32
    %c0_i32_0 = arith.constant 0 : i32
    %c0_i32_1 = arith.constant 0 : i32
    return %c0_i32, %c0_i32_0 : i32, i32
  }
  func.func @transform_5(%arg0: i32) -> (i32, i32) {
    %c0_i32 = arith.constant 0 : i32
    %c0_i32_0 = arith.constant 0 : i32
    %c0_i32_1 = arith.constant 0 : i32
    return %c0_i32, %c0_i32_0 : i32, i32
  }
  func.func @transform_6(%arg0: i32) -> (i32, i32) {
    %c0_i32 = arith.constant 0 : i32
    %c0_i32_0 = arith.constant 0 : i32
    %c0_i32_1 = arith.constant 0 : i32
    return %c0_i32, %c0_i32_0 : i32, i32
  }
  func.func @transform_7(%arg0: i32) -> (i32, i32) {
    %c0_i32 = arith.constant 0 : i32
    %c0_i32_0 = arith.constant 0 : i32
    %c0_i32_1 = arith.constant 0 : i32
    return %c0_i32, %c0_i32_0 : i32, i32
  }
  func.func @transform_8(%arg0: i32) -> (i32, i32) {
    %c0_i32 = arith.constant 0 : i32
    %c0_i32_0 = arith.constant 0 : i32
    %c0_i32_1 = arith.constant 0 : i32
    return %c0_i32, %c0_i32_0 : i32, i32
  }
  func.func @transform_9(%arg0: i32) -> (i32, i32) {
    %c0_i32 = arith.constant 0 : i32
    %c0_i32_0 = arith.constant 0 : i32
    return %arg0, %c0_i32 : i32, i32
  }
  func.func @transform_10(%arg0: i32) -> (i32, i32) {
    %c0_i32 = arith.constant 0 : i32
    %c0_i32_0 = arith.constant 0 : i32
    %c0_i32_1 = arith.constant 0 : i32
    return %c0_i32, %c0_i32_0 : i32, i32
  }
  func.func @transform_11(%arg0: i32) -> (i32, i32) {
    %c0_i32 = arith.constant 0 : i32
    %c0_i32_0 = arith.constant 0 : i32
    return %arg0, %c0_i32 : i32, i32
  }
}

</mosaic_0001>

<llo_original>
// kernel: _forward_jit.1
$region0: #{_forward_jit.1}
  #allocation0 [shape = 'u32[]', space=smem, size = 0x4, offset = 0x4, fixed_abs, tag = 'smem constant byte address 0x4 - core index']
  #allocation1 [shape = 'u32[72,128]{1,0:T(1,128)}', space=vmem, size = 0x9000, scoped, tag = 'internal scratch']
  %s0 = inlined_call_operand.vmem [shape: f32[8,32], index: 0, kind: input, shape index: {}]
  %s1 = inlined_call_operand.vmem [shape: bf16[32,128], index: 1, kind: input, shape index: {}]
  %s2 = inlined_call_operand.vmem [shape: f32[1,128], index: 2, kind: input, shape index: {}]
  %s3 = inlined_call_operand.vmem [shape: bf16[128,128], index: 3, kind: input, shape index: {}]
  %s4 = inlined_call_operand.vmem [shape: f32[1,128], index: 4, kind: input, shape index: {}]
  %s5 = inlined_call_operand.vmem [shape: bf16[128,128], index: 5, kind: input, shape index: {}]
  %s6 = inlined_call_operand.vmem [shape: f32[1,128], index: 6, kind: input, shape index: {}]
  %s7 = inlined_call_operand.vmem [shape: bf16[128,128], index: 7, kind: input, shape index: {}]
  %s8 = inlined_call_operand.vmem [shape: f32[1,128], index: 8, kind: input, shape index: {}]
  %s9 = inlined_call_operand.vmem [shape: f32[8,32], index: 9, kind: input, shape index: {}]
  %s10 = inlined_call_operand.vmem [shape: bf16[32,128], index: 10, kind: input, shape index: {}]
  %s11 = inlined_call_operand.hbm [shape: f32[8,128], index: 11, kind: output, shape index: {}]
  %s12 = sld [smem:[#allocation0]]
  $region54: #{_forward_jit.1} parent=0
    _
  %s14 = ssub.s32 1, %s12
  %s15 = scalar_select 0, %s14, %s12
  $region1: #{_forward_jit.1} parent=0
    #allocation2 [shape = 'u8[4096]{0}', space=vmem, size = 0x1000, scoped, tag = 'output window, operand 0, single buffered']
    #allocation3 [shape = 's32[1]{0}', space=sflag, size = 0x4, scoped, tag = 'scoped memory for _forward_jit.1']
    %16 = vsyncpa [#allocation3], 0
    // Predicated region
    $region2: #{_forward_jit.1} parent=1 // pred_check
      _
    $region3: #{_forward_jit.1} parent=1 // pred_check_branch
      %18 = sbr.rel (0) target = $region5
    $region4: #{_forward_jit.1} parent=1 // pred_region
      _
    $region5: #{_forward_jit.1} parent=1 // pred_fallthru
      _
    // Predicated region
    $region6: #{_forward_jit.1} parent=1 // pred_check
      _
    $region7: #{_forward_jit.1} parent=1 // pred_check_branch
      %20 = sbr.rel (0) target = $region9
    $region8: #{_forward_jit.1} parent=1 // pred_region
      _
    $region9: #{_forward_jit.1} parent=1 // pred_fallthru
      _
    // Predicated region
    $region10: #{_forward_jit.1} parent=1 // pred_check
      _
    $region11: #{_forward_jit.1} parent=1 // pred_check_branch
      %22 = sbr.rel (0) target = $region13
    $region12: #{_forward_jit.1} parent=1 // pred_region
      _
    $region13: #{_forward_jit.1} parent=1 // pred_fallthru
      _
    // Predicated region
    $region14: #{_forward_jit.1} parent=1 // pred_check
      _
    $region15: #{_forward_jit.1} parent=1 // pred_check_branch
      %24 = sbr.rel (0) target = $region17
    $region16: #{_forward_jit.1} parent=1 // pred_region
      _
    $region17: #{_forward_jit.1} parent=1 // pred_fallthru
      _
    // Predicated region
    $region18: #{_forward_jit.1} parent=1 // pred_check
      _
    $region19: #{_forward_jit.1} parent=1 // pred_check_branch
      %26 = sbr.rel (0) target = $region21
    $region20: #{_forward_jit.1} parent=1 // pred_region
      _
    $region21: #{_forward_jit.1} parent=1 // pred_fallthru
      _
    // Predicated region
    $region22: #{_forward_jit.1} parent=1 // pred_check
      _
    $region23: #{_forward_jit.1} parent=1 // pred_check_branch
      %28 = sbr.rel (0) target = $region25
    $region24: #{_forward_jit.1} parent=1 // pred_region
      _
    $region25: #{_forward_jit.1} parent=1 // pred_fallthru
      _
    // Predicated region
    $region26: #{_forward_jit.1} parent=1 // pred_check
      _
    $region27: #{_forward_jit.1} parent=1 // pred_check_branch
      %30 = sbr.rel (0) target = $region29
    $region28: #{_forward_jit.1} parent=1 // pred_region
      _
    $region29: #{_forward_jit.1} parent=1 // pred_fallthru
      _
    // Predicated region
    $region30: #{_forward_jit.1} parent=1 // pred_check
      _
    $region31: #{_forward_jit.1} parent=1 // pred_check_branch
      %32 = sbr.rel (0) target = $region33
    $region32: #{_forward_jit.1} parent=1 // pred_region
      _
    $region33: #{_forward_jit.1} parent=1 // pred_fallthru
      _
    // Predicated region
    $region34: #{_forward_jit.1} parent=1 // pred_check
      _
    $region35: #{_forward_jit.1} parent=1 // pred_check_branch
      %34 = sbr.rel (0) target = $region37
    $region36: #{_forward_jit.1} parent=1 // pred_region
      _
    $region37: #{_forward_jit.1} parent=1 // pred_fallthru
      _
    // Predicated region
    $region38: #{_forward_jit.1} parent=1 // pred_check
      _
    $region39: #{_forward_jit.1} parent=1 // pred_check_branch
      %36 = sbr.rel (0) target = $region41
    $region40: #{_forward_jit.1} parent=1 // pred_region
      _
    $region41: #{_forward_jit.1} parent=1 // pred_fallthru
      _
    // Predicated region
    $region42: #{_forward_jit.1} parent=1 // pred_check
      _
    $region43: #{_forward_jit.1} parent=1 // pred_check_branch
      %38 = sbr.rel (0) target = $region45
    $region44: #{_forward_jit.1} parent=1 // pred_region
      _
    $region45: #{_forward_jit.1} parent=1 // pred_fallthru
      _
    %v40 = vld [vmem:[%s0] sm:$0xff]
    %v41 = vpack.c.bf16 %v40, %v40
    %v42 = vld [vmem:[%s1] sm:$0xf]
    %v43 = vld [vmem:[%s1 + $0x4] sm:$0xf]
    %v44 = vld [vmem:[%s1 + $0x8] sm:$0xf]
    %v45 = vld [vmem:[%s1 + $0xc] sm:$0xf]
    %v46 = vld [vmem:[%s2] sm:$0x1]
    %v48 = vperm.slane %v46, 0
    %v54 = vunpack.c.l.b16 %v42
    %v55 = vunpack.c.l.b16 %v43
    %v56 = vunpack.c.l.b16 %v44
    %v57 = vunpack.c.l.b16 %v45
    %v58 = vpack.c.b16 %v55, %v54
    %v59 = vpack.c.b16 %v57, %v56
    %vm62 = vcmask 261120
    %v64 = vsel %vm62, %v41, 0
    %66 = vmatpush.bf16.msra.mxu0 0
    %67 = vmatpush.bf16.msra.mxu0 0
    %68 = vmatpush.bf16.msra.mxu0 0
    %69 = vmatpush.bf16.msra.mxu0 0
    %70 = vmatpush.bf16.msra.mxu0 0
    %71 = vmatpush.bf16.msra.mxu0 0
    %72 = vmatpush.bf16.msra.mxu0 %v59
    %73 = vmatpush.bf16.msra.mxu0 %v58
    %74 = vmatmul.bf16.gmra.mxu0 %v64
    %v75 = vpop.f32.mrf.mxu0
    %v76 = vadd.f32 %v48, %v75
    %v77 = vpop.f32.mrf.mxu0
    %78 = vdwg.mxu0
    %v79 = vmul.f32 %v76, 0.01
    %v80 = vmax.f32 %v76, %v79
    %v81 = vpack.c.bf16 %v80, %v80
    %v82 = vld [vmem:[%s3] sm:$0xf]
    %v83 = vld [vmem:[%s3 + $0x4] sm:$0xf]
    %v84 = vld [vmem:[%s3 + $0x8] sm:$0xf]
    %v85 = vld [vmem:[%s3 + $0xc] sm:$0xf]
    %v86 = vld [vmem:[%s3 + $0x10] sm:$0xf]
    %v87 = vld [vmem:[%s3 + $0x14] sm:$0xf]
    %v88 = vld [vmem:[%s3 + $0x18] sm:$0xf]
    %v89 = vld [vmem:[%s3 + $0x1c] sm:$0xf]
    %v90 = vld [vmem:[%s3 + $0x20] sm:$0xf]
    %v91 = vld [vmem:[%s3 + $0x24] sm:$0xf]
    %v92 = vld [vmem:[%s3 + $0x28] sm:$0xf]
    %v93 = vld [vmem:[%s3 + $0x2c] sm:$0xf]
    %v94 = vld [vmem:[%s3 + $0x30] sm:$0xf]
    %v95 = vld [vmem:[%s3 + $0x34] sm:$0xf]
    %v96 = vld [vmem:[%s3 + $0x38] sm:$0xf]
    %v97 = vld [vmem:[%s3 + $0x3c] sm:$0xf]
    %v98 = vld [vmem:[%s4] sm:$0x1]
    %v100 = vperm.slane %v98, 0
    %v118 = vunpack.c.l.b16 %v82
    %v119 = vunpack.c.l.b16 %v83
    %v120 = vunpack.c.l.b16 %v84
    %v121 = vunpack.c.l.b16 %v85
    %v122 = vunpack.c.l.b16 %v86
    %v123 = vunpack.c.l.b16 %v87
    %v124 = vunpack.c.l.b16 %v88
    %v125 = vunpack.c.l.b16 %v89
    %v126 = vunpack.c.l.b16 %v90
    %v127 = vunpack.c.l.b16 %v91
    %v128 = vunpack.c.l.b16 %v92
    %v129 = vunpack.c.l.b16 %v93
    %v130 = vunpack.c.l.b16 %v94
    %v131 = vunpack.c.l.b16 %v95
    %v132 = vunpack.c.l.b16 %v96
    %v133 = vunpack.c.l.b16 %v97
    %v134 = vpack.c.b16 %v119, %v118
    %v135 = vpack.c.b16 %v121, %v120
    %v136 = vpack.c.b16 %v123, %v122
    %v137 = vpack.c.b16 %v125, %v124
    %v138 = vpack.c.b16 %v127, %v126
    %v139 = vpack.c.b16 %v129, %v128
    %v140 = vpack.c.b16 %v131, %v130
    %v141 = vpack.c.b16 %v133, %v132
    %150 = vmatpush.bf16.msra.mxu0 %v141
    %151 = vmatpush.bf16.msra.mxu0 %v140
    %152 = vmatpush.bf16.msra.mxu0 %v139
    %153 = vmatpush.bf16.msra.mxu0 %v138
    %154 = vmatpush.bf16.msra.mxu0 %v137
    %155 = vmatpush.bf16.msra.mxu0 %v136
    %156 = vmatpush.bf16.msra.mxu0 %v135
    %157 = vmatpush.bf16.msra.mxu0 %v134
    %158 = vmatmul.bf16.gmra.mxu0 %v81
    %v159 = vpop.f32.mrf.mxu0
    %v160 = vadd.f32 %v100, %v159
    %v161 = vpop.f32.mrf.mxu0
    %162 = vdwg.mxu0
    %v163 = vmul.f32 %v160, 0.01
    %v164 = vmax.f32 %v160, %v163
    %v165 = vpack.c.bf16 %v164, %v164
    %v166 = vld [vmem:[%s5] sm:$0xf]
    %v167 = vld [vmem:[%s5 + $0x4] sm:$0xf]
    %v168 = vld [vmem:[%s5 + $0x8] sm:$0xf]
    %v169 = vld [vmem:[%s5 + $0xc] sm:$0xf]
    %v170 = vld [vmem:[%s5 + $0x10] sm:$0xf]
    %v171 = vld [vmem:[%s5 + $0x14] sm:$0xf]
    %v172 = vld [vmem:[%s5 + $0x18] sm:$0xf]
    %v173 = vld [vmem:[%s5 + $0x1c] sm:$0xf]
    %v174 = vld [vmem:[%s5 + $0x20] sm:$0xf]
    %v175 = vld [vmem:[%s5 + $0x24] sm:$0xf]
    %v176 = vld [vmem:[%s5 + $0x28] sm:$0xf]
    %v177 = vld [vmem:[%s5 + $0x2c] sm:$0xf]
    %v178 = vld [vmem:[%s5 + $0x30] sm:$0xf]
    %v179 = vld [vmem:[%s5 + $0x34] sm:$0xf]
    %v180 = vld [vmem:[%s5 + $0x38] sm:$0xf]
    %v181 = vld [vmem:[%s5 + $0x3c] sm:$0xf]
    %v182 = vld [vmem:[%s6] sm:$0x1]
    %v184 = vperm.slane %v182, 0
    %v202 = vunpack.c.l.b16 %v166
    %v203 = vunpack.c.l.b16 %v167
    %v204 = vunpack.c.l.b16 %v168
    %v205 = vunpack.c.l.b16 %v169
    %v206 = vunpack.c.l.b16 %v170
    %v207 = vunpack.c.l.b16 %v171
    %v208 = vunpack.c.l.b16 %v172
    %v209 = vunpack.c.l.b16 %v173
    %v210 = vunpack.c.l.b16 %v174
    %v211 = vunpack.c.l.b16 %v175
    %v212 = vunpack.c.l.b16 %v176
    %v213 = vunpack.c.l.b16 %v177
    %v214 = vunpack.c.l.b16 %v178
    %v215 = vunpack.c.l.b16 %v179
    %v216 = vunpack.c.l.b16 %v180
    %v217 = vunpack.c.l.b16 %v181
    %v218 = vpack.c.b16 %v203, %v202
    %v219 = vpack.c.b16 %v205, %v204
    %v220 = vpack.c.b16 %v207, %v206
    %v221 = vpack.c.b16 %v209, %v208
    %v222 = vpack.c.b16 %v211, %v210
    %v223 = vpack.c.b16 %v213, %v212
    %v224 = vpack.c.b16 %v215, %v214
    %v225 = vpack.c.b16 %v217, %v216
    %234 = vmatpush.bf16.msra.mxu0 %v225
    %235 = vmatpush.bf16.msra.mxu0 %v224
    %236 = vmatpush.bf16.msra.mxu0 %v223
    %237 = vmatpush.bf16.msra.mxu0 %v222
    %238 = vmatpush.bf16.msra.mxu0 %v221
    %239 = vmatpush.bf16.msra.mxu0 %v220
    %240 = vmatpush.bf16.msra.mxu0 %v219
    %241 = vmatpush.bf16.msra.mxu0 %v218
    %242 = vmatmul.bf16.gmra.mxu0 %v165
    %v243 = vpop.f32.mrf.mxu0
    %v244 = vadd.f32 %v184, %v243
    %v245 = vpop.f32.mrf.mxu0
    %246 = vdwg.mxu0
    %v247 = vmul.f32 %v244, 0.01
    %v248 = vmax.f32 %v244, %v247
    %v249 = vpack.c.bf16 %v248, %v248
    %v250 = vld [vmem:[%s7] sm:$0xf]
    %v251 = vld [vmem:[%s7 + $0x4] sm:$0xf]
    %v252 = vld [vmem:[%s7 + $0x8] sm:$0xf]
    %v253 = vld [vmem:[%s7 + $0xc] sm:$0xf]
    %v254 = vld [vmem:[%s7 + $0x10] sm:$0xf]
    %v255 = vld [vmem:[%s7 + $0x14] sm:$0xf]
    %v256 = vld [vmem:[%s7 + $0x18] sm:$0xf]
    %v257 = vld [vmem:[%s7 + $0x1c] sm:$0xf]
    %v258 = vld [vmem:[%s7 + $0x20] sm:$0xf]
    %v259 = vld [vmem:[%s7 + $0x24] sm:$0xf]
    %v260 = vld [vmem:[%s7 + $0x28] sm:$0xf]
    %v261 = vld [vmem:[%s7 + $0x2c] sm:$0xf]
    %v262 = vld [vmem:[%s7 + $0x30] sm:$0xf]
    %v263 = vld [vmem:[%s7 + $0x34] sm:$0xf]
    %v264 = vld [vmem:[%s7 + $0x38] sm:$0xf]
    %v265 = vld [vmem:[%s7 + $0x3c] sm:$0xf]
    %v266 = vld [vmem:[%s8] sm:$0x1]
    %v268 = vperm.slane %v266, 0
    %v286 = vunpack.c.l.b16 %v250
    %v287 = vunpack.c.l.b16 %v251
    %v288 = vunpack.c.l.b16 %v252
    %v289 = vunpack.c.l.b16 %v253
    %v290 = vunpack.c.l.b16 %v254
    %v291 = vunpack.c.l.b16 %v255
    %v292 = vunpack.c.l.b16 %v256
    %v293 = vunpack.c.l.b16 %v257
    %v294 = vunpack.c.l.b16 %v258
    %v295 = vunpack.c.l.b16 %v259
    %v296 = vunpack.c.l.b16 %v260
    %v297 = vunpack.c.l.b16 %v261
    %v298 = vunpack.c.l.b16 %v262
    %v299 = vunpack.c.l.b16 %v263
    %v300 = vunpack.c.l.b16 %v264
    %v301 = vunpack.c.l.b16 %v265
    %v302 = vpack.c.b16 %v287, %v286
    %v303 = vpack.c.b16 %v289, %v288
    %v304 = vpack.c.b16 %v291, %v290
    %v305 = vpack.c.b16 %v293, %v292
    %v306 = vpack.c.b16 %v295, %v294
    %v307 = vpack.c.b16 %v297, %v296
    %v308 = vpack.c.b16 %v299, %v298
    %v309 = vpack.c.b16 %v301, %v300
    %318 = vmatpush.bf16.msra.mxu0 %v309
    %319 = vmatpush.bf16.msra.mxu0 %v308
    %320 = vmatpush.bf16.msra.mxu0 %v307
    %321 = vmatpush.bf16.msra.mxu0 %v306
    %322 = vmatpush.bf16.msra.mxu0 %v305
    %323 = vmatpush.bf16.msra.mxu0 %v304
    %324 = vmatpush.bf16.msra.mxu0 %v303
    %325 = vmatpush.bf16.msra.mxu0 %v302
    %326 = vmatmul.bf16.gmra.mxu0 %v249
    %v327 = vpop.f32.mrf.mxu0
    %v328 = vadd.f32 %v268, %v327
    %v329 = vpop.f32.mrf.mxu0
    %330 = vdwg.mxu0
    %v331 = vld [vmem:[%s9] sm:$0xff]
    %v332 = vpack.c.bf16 %v331, %v331
    %v333 = vld [vmem:[%s10] sm:$0xf]
    %v334 = vld [vmem:[%s10 + $0x4] sm:$0xf]
    %v335 = vld [vmem:[%s10 + $0x8] sm:$0xf]
    %v336 = vld [vmem:[%s10 + $0xc] sm:$0xf]
    %v341 = vunpack.c.l.b16 %v333
    %v342 = vunpack.c.l.b16 %v334
    %v343 = vunpack.c.l.b16 %v335
    %v344 = vunpack.c.l.b16 %v336
    %v345 = vpack.c.b16 %v342, %v341
    %v346 = vpack.c.b16 %v344, %v343
    %v350 = vsel %vm62, %v332, 0
    %352 = vmatpush.bf16.msra.mxu0 0
    %353 = vmatpush.bf16.msra.mxu0 0
    %354 = vmatpush.bf16.msra.mxu0 0
    %355 = vmatpush.bf16.msra.mxu0 0
    %356 = vmatpush.bf16.msra.mxu0 0
    %357 = vmatpush.bf16.msra.mxu0 0
    %358 = vmatpush.bf16.msra.mxu0 %v346
    %359 = vmatpush.bf16.msra.mxu0 %v345
    %360 = vmatmul.bf16.gmra.mxu0 %v350
    %v361 = vpop.f32.mrf.mxu0
    %v362 = vadd.f32 0.0, %v361
    %v363 = vpop.f32.mrf.mxu0
    %364 = vdwg.mxu0
    %v365 = vadd.f32 %v328, %v362
    %366 = vst [vmem:[#allocation2] sm:$0xff] %v365
    // Predicated region
    $region46: #{_forward_jit.1} parent=1 // pred_check
      _
    $region47: #{_forward_jit.1} parent=1 // pred_check_branch
      %368 = sbr.rel (0) target = $region49
    $region48: #{_forward_jit.1} parent=1 // pred_region
      %370 = vsyncadd [#allocation3], 0
      %s372 = sshll.u32 [#allocation2], 4
      %s373 = int_to_ptr.vmem [resolvable:$true] %s372
      %s374 = sshll.u32 %s11, 4
      %s375 = int_to_ptr.hbm [resolvable:$true] %s374
      %377 = dma.vmem_to_hbm [thread:$0]  %s373, 128, %s375, [#allocation3]
    $region49: #{_forward_jit.1} parent=1 // pred_fallthru
      _
    // Predicated region
    $region50: #{_forward_jit.1} parent=1 // pred_check
      _
    $region51: #{_forward_jit.1} parent=1 // pred_check_branch
      %379 = sbr.rel (0) target = $region53
    $region52: #{_forward_jit.1} parent=1 // pred_region
      %381 = dma.done [#allocation3], 128
    $region53: #{_forward_jit.1} parent=1 // pred_fallthru
      _
    %382 = vsyncpa [#allocation3], 1

// kernel: _forward_jit.1
$region0: #{_forward_jit.1}
  #allocation0 [shape = 'u32[]', space=smem, size = 0x4, offset = 0x4, fixed_abs, tag = 'smem constant byte address 0x4 - core index']
  #allocation1 [shape = 'u32[72,128]{1,0:T(1,128)}', space=vmem, size = 0x9000, scoped, tag = 'internal scratch']
  %s0 = inlined_call_operand.vmem [shape: f32[8,32], index: 0, kind: input, shape index: {}]
  %s1 = inlined_call_operand.vmem [shape: bf16[32,128], index: 1, kind: input, shape index: {}]
  %s2 = inlined_call_operand.vmem [shape: f32[1,128], index: 2, kind: input, shape index: {}]
  %s3 = inlined_call_operand.vmem [shape: bf16[128,128], index: 3, kind: input, shape index: {}]
  %s4 = inlined_call_operand.vmem [shape: f32[1,128], index: 4, kind: input, shape index: {}]
  %s5 = inlined_call_operand.vmem [shape: bf16[128,128], index: 5, kind: input, shape index: {}]
  %s6 = inlined_call_operand.vmem [shape: f32[1,128], index: 6, kind: input, shape index: {}]
  %s7 = inlined_call_operand.vmem [shape: bf16[128,128], index: 7, kind: input, shape index: {}]
  %s8 = inlined_call_operand.vmem [shape: f32[1,128], index: 8, kind: input, shape index: {}]
  %s9 = inlined_call_operand.vmem [shape: f32[8,32], index: 9, kind: input, shape index: {}]
  %s10 = inlined_call_operand.vmem [shape: bf16[32,128], index: 10, kind: input, shape index: {}]
  %s11 = inlined_call_operand.hbm [shape: f32[8,128], index: 11, kind: output, shape index: {}]
  %s12 = sld [smem:[#allocation0]]
  $region54: #{_forward_jit.1} parent=0
    _
  %s14 = ssub.s32 1, %s12
  %s15 = scalar_select 0, %s14, %s12
  $region1: #{_forward_jit.1} parent=0
    #allocation2 [shape = 'u8[4096]{0}', space=vmem, size = 0x1000, scoped, tag = 'output window, operand 0, single buffered']
    #allocation3 [shape = 's32[1]{0}', space=sflag, size = 0x4, scoped, tag = 'scoped memory for _forward_jit.1']
    %16 = vsyncpa [#allocation3], 0
    // Predicated region
    $region2: #{_forward_jit.1} parent=1 // pred_check
      _
    $region3: #{_forward_jit.1} parent=1 // pred_check_branch
      %18 = sbr.rel (0) target = $region5
    $region4: #{_forward_jit.1} parent=1 // pred_region
      _
    $region5: #{_forward_jit.1} parent=1 // pred_fallthru
      _
    // Predicated region
    $region6: #{_forward_jit.1} parent=1 // pred_check
      _
    $region7: #{_forward_jit.1} parent=1 // pred_check_branch
      %20 = sbr.rel (0) target = $region9
    $region8: #{_forward_jit.1} parent=1 // pred_region
      _
    $region9: #{_forward_jit.1} parent=1 // pred_fallthru
      _
    // Predicated region
    $region10: #{_forward_jit.1} parent=1 // pred_check
      _
    $region11: #{_forward_jit.1} parent=1 // pred_check_branch
      %22 = sbr.rel (0) target = $region13
    $region12: #{_forward_jit.1} parent=1 // pred_region
      _
    $region13: #{_forward_jit.1} parent=1 // pred_fallthru
      _
    // Predicated region
    $region14: #{_forward_jit.1} parent=1 // pred_check
      _
    $region15: #{_forward_jit.1} parent=1 // pred_check_branch
      %24 = sbr.rel (0) target = $region17
    $region16: #{_forward_jit.1} parent=1 // pred_region
      _
    $region17: #{_forward_jit.1} parent=1 // pred_fallthru
      _
    // Predicated region
    $region18: #{_forward_jit.1} parent=1 // pred_check
      _
    $region19: #{_forward_jit.1} parent=1 // pred_check_branch
      %26 = sbr.rel (0) target = $region21
    $region20: #{_forward_jit.1} parent=1 // pred_region
      _
    $region21: #{_forward_jit.1} parent=1 // pred_fallthru
      _
    // Predicated region
    $region22: #{_forward_jit.1} parent=1 // pred_check
      _
    $region23: #{_forward_jit.1} parent=1 // pred_check_branch
      %28 = sbr.rel (0) target = $region25
    $region24: #{_forward_jit.1} parent=1 // pred_region
      _
    $region25: #{_forward_jit.1} parent=1 // pred_fallthru
      _
    // Predicated region
    $region26: #{_forward_jit.1} parent=1 // pred_check
      _
    $region27: #{_forward_jit.1} parent=1 // pred_check_branch
      %30 = sbr.rel (0) target = $region29
    $region28: #{_forward_jit.1} parent=1 // pred_region
      _
    $region29: #{_forward_jit.1} parent=1 // pred_fallthru
      _
    // Predicated region
    $region30: #{_forward_jit.1} parent=1 // pred_check
      _
    $region31: #{_forward_jit.1} parent=1 // pred_check_branch
      %32 = sbr.rel (0) target = $region33
    $region32: #{_forward_jit.1} parent=1 // pred_region
      _
    $region33: #{_forward_jit.1} parent=1 // pred_fallthru
      _
    // Predicated region
    $region34: #{_forward_jit.1} parent=1 // pred_check
      _
    $region35: #{_forward_jit.1} parent=1 // pred_check_branch
      %34 = sbr.rel (0) target = $region37
    $region36: #{_forward_jit.1} parent=1 // pred_region
      _
    $region37: #{_forward_jit.1} parent=1 // pred_fallthru
      _
    // Predicated region
    $region38: #{_forward_jit.1} parent=1 // pred_check
      _
    $region39: #{_forward_jit.1} parent=1 // pred_check_branch
      %36 = sbr.rel (0) target = $region41
    $region40: #{_forward_jit.1} parent=1 // pred_region
      _
    $region41: #{_forward_jit.1} parent=1 // pred_fallthru
      _
    // Predicated region
    $region42: #{_forward_jit.1} parent=1 // pred_check
      _
    $region43: #{_forward_jit.1} parent=1 // pred_check_branch
      %38 = sbr.rel (0) target = $region45
    $region44: #{_forward_jit.1} parent=1 // pred_region
      _
    $region45: #{_forward_jit.1} parent=1 // pred_fallthru
      _
    %v40 = vld [vmem:[%s0] sm:$0xff]
    %v41 = vpack.c.bf16 %v40, %v40
    %v42 = vld [vmem:[%s1] sm:$0xf]
    %v43 = vld [vmem:[%s1 + $0x4] sm:$0xf]
    %v44 = vld [vmem:[%s1 + $0x8] sm:$0xf]
    %v45 = vld [vmem:[%s1 + $0xc] sm:$0xf]
    %v46 = vld [vmem:[%s2] sm:$0x1]
    %v48 = vperm.slane %v46, 0
    %v54 = vunpack.c.l.b16 %v42
    %v55 = vunpack.c.l.b16 %v43
    %v56 = vunpack.c.l.b16 %v44
    %v57 = vunpack.c.l.b16 %v45
    %v58 = vpack.c.b16 %v55, %v54
    %v59 = vpack.c.b16 %v57, %v56
    %vm62 = vcmask 261120
    %v64 = vsel %vm62, %v41, 0
    %66 = vmatpush.bf16.msra.mxu0 0
    %67 = vmatpush.bf16.msra.mxu0 0
    %68 = vmatpush.bf16.msra.mxu0 0
    %69 = vmatpush.bf16.msra.mxu0 0
    %70 = vmatpush.bf16.msra.mxu0 0
    %71 = vmatpush.bf16.msra.mxu0 0
    %72 = vmatpush.bf16.msra.mxu0 %v59
    %73 = vmatpush.bf16.msra.mxu0 %v58
    %74 = vmatmul.bf16.gmra.mxu0 %v64
    %v75 = vpop.f32.mrf.mxu0
    %v76 = vadd.f32 %v48, %v75
    %v77 = vpop.f32.mrf.mxu0
    %78 = vdwg.mxu0
    %v79 = vmul.f32 %v76, 0.01
    %v80 = vmax.f32 %v76, %v79
    %v81 = vpack.c.bf16 %v80, %v80
    %v82 = vld [vmem:[%s3] sm:$0xf]
    %v83 = vld [vmem:[%s3 + $0x4] sm:$0xf]
    %v84 = vld [vmem:[%s3 + $0x8] sm:$0xf]
    %v85 = vld [vmem:[%s3 + $0xc] sm:$0xf]
    %v86 = vld [vmem:[%s3 + $0x10] sm:$0xf]
    %v87 = vld [vmem:[%s3 + $0x14] sm:$0xf]
    %v88 = vld [vmem:[%s3 + $0x18] sm:$0xf]
    %v89 = vld [vmem:[%s3 + $0x1c] sm:$0xf]
    %v90 = vld [vmem:[%s3 + $0x20] sm:$0xf]
    %v91 = vld [vmem:[%s3 + $0x24] sm:$0xf]
    %v92 = vld [vmem:[%s3 + $0x28] sm:$0xf]
    %v93 = vld [vmem:[%s3 + $0x2c] sm:$0xf]
    %v94 = vld [vmem:[%s3 + $0x30] sm:$0xf]
    %v95 = vld [vmem:[%s3 + $0x34] sm:$0xf]
    %v96 = vld [vmem:[%s3 + $0x38] sm:$0xf]
    %v97 = vld [vmem:[%s3 + $0x3c] sm:$0xf]
    %v98 = vld [vmem:[%s4] sm:$0x1]
    %v100 = vperm.slane %v98, 0
    %v118 = vunpack.c.l.b16 %v82
    %v119 = vunpack.c.l.b16 %v83
    %v120 = vunpack.c.l.b16 %v84
    %v121 = vunpack.c.l.b16 %v85
    %v122 = vunpack.c.l.b16 %v86
    %v123 = vunpack.c.l.b16 %v87
    %v124 = vunpack.c.l.b16 %v88
    %v125 = vunpack.c.l.b16 %v89
    %v126 = vunpack.c.l.b16 %v90
    %v127 = vunpack.c.l.b16 %v91
    %v128 = vunpack.c.l.b16 %v92
    %v129 = vunpack.c.l.b16 %v93
    %v130 = vunpack.c.l.b16 %v94
    %v131 = vunpack.c.l.b16 %v95
    %v132 = vunpack.c.l.b16 %v96
    %v133 = vunpack.c.l.b16 %v97
    %v134 = vpack.c.b16 %v119, %v118
    %v135 = vpack.c.b16 %v121, %v120
    %v136 = vpack.c.b16 %v123, %v122
    %v137 = vpack.c.b16 %v125, %v124
    %v138 = vpack.c.b16 %v127, %v126
    %v139 = vpack.c.b16 %v129, %v128
    %v140 = vpack.c.b16 %v131, %v130
    %v141 = vpack.c.b16 %v133, %v132
    %150 = vmatpush.bf16.msra.mxu0 %v141
    %151 = vmatpush.bf16.msra.mxu0 %v140
    %152 = vmatpush.bf16.msra.mxu0 %v139
    %153 = vmatpush.bf16.msra.mxu0 %v138
    %154 = vmatpush.bf16.msra.mxu0 %v137
    %155 = vmatpush.bf16.msra.mxu0 %v136
    %156 = vmatpush.bf16.msra.mxu0 %v135
    %157 = vmatpush.bf16.msra.mxu0 %v134
    %158 = vmatmul.bf16.gmra.mxu0 %v81
    %v159 = vpop.f32.mrf.mxu0
    %v160 = vadd.f32 %v100, %v159
    %v161 = vpop.f32.mrf.mxu0
    %162 = vdwg.mxu0
    %v163 = vmul.f32 %v160, 0.01
    %v164 = vmax.f32 %v160, %v163
    %v165 = vpack.c.bf16 %v164, %v164
    %v166 = vld [vmem:[%s5] sm:$0xf]
    %v167 = vld [vmem:[%s5 + $0x4] sm:$0xf]
    %v168 = vld [vmem:[%s5 + $0x8] sm:$0xf]
    %v169 = vld [vmem:[%s5 + $0xc] sm:$0xf]
    %v170 = vld [vmem:[%s5 + $0x10] sm:$0xf]
    %v171 = vld [vmem:[%s5 + $0x14] sm:$0xf]
    %v172 = vld [vmem:[%s5 + $0x18] sm:$0xf]
    %v173 = vld [vmem:[%s5 + $0x1c] sm:$0xf]
    %v174 = vld [vmem:[%s5 + $0x20] sm:$0xf]
    %v175 = vld [vmem:[%s5 + $0x24] sm:$0xf]
    %v176 = vld [vmem:[%s5 + $0x28] sm:$0xf]
    %v177 = vld [vmem:[%s5 + $0x2c] sm:$0xf]
    %v178 = vld [vmem:[%s5 + $0x30] sm:$0xf]
    %v179 = vld [vmem:[%s5 + $0x34] sm:$0xf]
    %v180 = vld [vmem:[%s5 + $0x38] sm:$0xf]
    %v181 = vld [vmem:[%s5 + $0x3c] sm:$0xf]
    %v182 = vld [vmem:[%s6] sm:$0x1]
    %v184 = vperm.slane %v182, 0
    %v202 = vunpack.c.l.b16 %v166
    %v203 = vunpack.c.l.b16 %v167
    %v204 = vunpack.c.l.b16 %v168
    %v205 = vunpack.c.l.b16 %v169
    %v206 = vunpack.c.l.b16 %v170
    %v207 = vunpack.c.l.b16 %v171
    %v208 = vunpack.c.l.b16 %v172
    %v209 = vunpack.c.l.b16 %v173
    %v210 = vunpack.c.l.b16 %v174
    %v211 = vunpack.c.l.b16 %v175
    %v212 = vunpack.c.l.b16 %v176
    %v213 = vunpack.c.l.b16 %v177
    %v214 = vunpack.c.l.b16 %v178
    %v215 = vunpack.c.l.b16 %v179
    %v216 = vunpack.c.l.b16 %v180
    %v217 = vunpack.c.l.b16 %v181
    %v218 = vpack.c.b16 %v203, %v202
    %v219 = vpack.c.b16 %v205, %v204
    %v220 = vpack.c.b16 %v207, %v206
    %v221 = vpack.c.b16 %v209, %v208
    %v222 = vpack.c.b16 %v211, %v210
    %v223 = vpack.c.b16 %v213, %v212
    %v224 = vpack.c.b16 %v215, %v214
    %v225 = vpack.c.b16 %v217, %v216
    %234 = vmatpush.bf16.msra.mxu0 %v225
    %235 = vmatpush.bf16.msra.mxu0 %v224
    %236 = vmatpush.bf16.msra.mxu0 %v223
    %237 = vmatpush.bf16.msra.mxu0 %v222
    %238 = vmatpush.bf16.msra.mxu0 %v221
    %239 = vmatpush.bf16.msra.mxu0 %v220
    %240 = vmatpush.bf16.msra.mxu0 %v219
    %241 = vmatpush.bf16.msra.mxu0 %v218
    %242 = vmatmul.bf16.gmra.mxu0 %v165
    %v243 = vpop.f32.mrf.mxu0
    %v244 = vadd.f32 %v184, %v243
    %v245 = vpop.f32.mrf.mxu0
    %246 = vdwg.mxu0
    %v247 = vmul.f32 %v244, 0.01
    %v248 = vmax.f32 %v244, %v247
    %v249 = vpack.c.bf16 %v248, %v248
    %v250 = vld [vmem:[%s7] sm:$0xf]
    %v251 = vld [vmem:[%s7 + $0x4] sm:$0xf]
    %v252 = vld [vmem:[%s7 + $0x8] sm:$0xf]
    %v253 = vld [vmem:[%s7 + $0xc] sm:$0xf]
    %v254 = vld [vmem:[%s7 + $0x10] sm:$0xf]
    %v255 = vld [vmem:[%s7 + $0x14] sm:$0xf]
    %v256 = vld [vmem:[%s7 + $0x18] sm:$0xf]
    %v257 = vld [vmem:[%s7 + $0x1c] sm:$0xf]
    %v258 = vld [vmem:[%s7 + $0x20] sm:$0xf]
    %v259 = vld [vmem:[%s7 + $0x24] sm:$0xf]
    %v260 = vld [vmem:[%s7 + $0x28] sm:$0xf]
    %v261 = vld [vmem:[%s7 + $0x2c] sm:$0xf]
    %v262 = vld [vmem:[%s7 + $0x30] sm:$0xf]
    %v263 = vld [vmem:[%s7 + $0x34] sm:$0xf]
    %v264 = vld [vmem:[%s7 + $0x38] sm:$0xf]
    %v265 = vld [vmem:[%s7 + $0x3c] sm:$0xf]
    %v266 = vld [vmem:[%s8] sm:$0x1]
    %v268 = vperm.slane %v266, 0
    %v286 = vunpack.c.l.b16 %v250
    %v287 = vunpack.c.l.b16 %v251
    %v288 = vunpack.c.l.b16 %v252
    %v289 = vunpack.c.l.b16 %v253
    %v290 = vunpack.c.l.b16 %v254
    %v291 = vunpack.c.l.b16 %v255
    %v292 = vunpack.c.l.b16 %v256
    %v293 = vunpack.c.l.b16 %v257
    %v294 = vunpack.c.l.b16 %v258
    %v295 = vunpack.c.l.b16 %v259
    %v296 = vunpack.c.l.b16 %v260
    %v297 = vunpack.c.l.b16 %v261
    %v298 = vunpack.c.l.b16 %v262
    %v299 = vunpack.c.l.b16 %v263
    %v300 = vunpack.c.l.b16 %v264
    %v301 = vunpack.c.l.b16 %v265
    %v302 = vpack.c.b16 %v287, %v286
    %v303 = vpack.c.b16 %v289, %v288
    %v304 = vpack.c.b16 %v291, %v290
    %v305 = vpack.c.b16 %v293, %v292
    %v306 = vpack.c.b16 %v295, %v294
    %v307 = vpack.c.b16 %v297, %v296
    %v308 = vpack.c.b16 %v299, %v298
    %v309 = vpack.c.b16 %v301, %v300
    %318 = vmatpush.bf16.msra.mxu0 %v309
    %319 = vmatpush.bf16.msra.mxu0 %v308
    %320 = vmatpush.bf16.msra.mxu0 %v307
    %321 = vmatpush.bf16.msra.mxu0 %v306
    %322 = vmatpush.bf16.msra.mxu0 %v305
    %323 = vmatpush.bf16.msra.mxu0 %v304
    %324 = vmatpush.bf16.msra.mxu0 %v303
    %325 = vmatpush.bf16.msra.mxu0 %v302
    %326 = vmatmul.bf16.gmra.mxu0 %v249
    %v327 = vpop.f32.mrf.mxu0
    %v328 = vadd.f32 %v268, %v327
    %v329 = vpop.f32.mrf.mxu0
    %330 = vdwg.mxu0
    %v331 = vld [vmem:[%s9] sm:$0xff]
    %v332 = vpack.c.bf16 %v331, %v331
    %v333 = vld [vmem:[%s10] sm:$0xf]
    %v334 = vld [vmem:[%s10 + $0x4] sm:$0xf]
    %v335 = vld [vmem:[%s10 + $0x8] sm:$0xf]
    %v336 = vld [vmem:[%s10 + $0xc] sm:$0xf]
    %v341 = vunpack.c.l.b16 %v333
    %v342 = vunpack.c.l.b16 %v334
    %v343 = vunpack.c.l.b16 %v335
    %v344 = vunpack.c.l.b16 %v336
    %v345 = vpack.c.b16 %v342, %v341
    %v346 = vpack.c.b16 %v344, %v343
    %v350 = vsel %vm62, %v332, 0
    %352 = vmatpush.bf16.msra.mxu0 0
    %353 = vmatpush.bf16.msra.mxu0 0
    %354 = vmatpush.bf16.msra.mxu0 0
    %355 = vmatpush.bf16.msra.mxu0 0
    %356 = vmatpush.bf16.msra.mxu0 0
    %357 = vmatpush.bf16.msra.mxu0 0
    %358 = vmatpush.bf16.msra.mxu0 %v346
    %359 = vmatpush.bf16.msra.mxu0 %v345
    %360 = vmatmul.bf16.gmra.mxu0 %v350
    %v361 = vpop.f32.mrf.mxu0
    %v362 = vadd.f32 0.0, %v361
    %v363 = vpop.f32.mrf.mxu0
    %364 = vdwg.mxu0
    %v365 = vadd.f32 %v328, %v362
    %366 = vst [vmem:[#allocation2] sm:$0xff] %v365
    // Predicated region
    $region46: #{_forward_jit.1} parent=1 // pred_check
      _
    $region47: #{_forward_jit.1} parent=1 // pred_check_branch
      %368 = sbr.rel (0) target = $region49
    $region48: #{_forward_jit.1} parent=1 // pred_region
      %370 = vsyncadd [#allocation3], 0
      %s372 = sshll.u32 [#allocation2], 4
      %s373 = int_to_ptr.vmem [resolvable:$true] %s372
      %s374 = sshll.u32 %s11, 4
      %s375 = int_to_ptr.hbm [resolvable:$true] %s374
      %377 = dma.vmem_to_hbm [thread:$0]  %s373, 128, %s375, [#allocation3]
    $region49: #{_forward_jit.1} parent=1 // pred_fallthru
      _
    // Predicated region
    $region50: #{_forward_jit.1} parent=1 // pred_check
      _
    $region51: #{_forward_jit.1} parent=1 // pred_check_branch
      %379 = sbr.rel (0) target = $region53
    $region52: #{_forward_jit.1} parent=1 // pred_region
      %381 = dma.done [#allocation3], 128
    $region53: #{_forward_jit.1} parent=1 // pred_fallthru
      _
    %382 = vsyncpa [#allocation3], 1

</llo_original>
